<compile_context>
chip_gen: v6e
topology: v6e:2x2x1
jax: 0.10.0
libtpu: 0.0.40
codegen_flags: <defaults>
</compile_context>

<pallas_src>
import numpy as np
import jax
import jax.numpy as jnp
from jax.experimental import pallas as pl
from jax.experimental.pallas import tpu as pltpu

OUT_H = 42
OUT_W = 42

# Grayscale weights used by torchvision.transforms.Grayscale (rgb_to_grayscale).
_R_W = 0.2989
_G_W = 0.5870
_B_W = 0.1140

_MAX_B_TILE = 32   # images per grid step (~2.7 MB input block for 84x84 RGB f32)


def _bilinear_matrix(out_size: int, in_size: int) -> np.ndarray:
    """Row-interpolation matrix W (out_size, in_size) for bilinear resize,
    matching PyTorch F.interpolate(..., mode='bilinear', align_corners=False),
    no antialias.  Built in numpy so it is a baked compile-time constant."""
    scale = in_size / out_size
    i = np.arange(out_size, dtype=np.float64)
    src = (i + 0.5) * scale - 0.5
    src = np.clip(src, 0.0, float(in_size - 1))      # PyTorch clamps negatives to 0
    lo = np.floor(src).astype(np.int64)
    hi = np.minimum(lo + 1, in_size - 1)
    frac = src - lo
    w = np.zeros((out_size, in_size), np.float64)
    rows = np.arange(out_size)
    np.add.at(w, (rows, lo), 1.0 - frac)
    np.add.at(w, (rows, hi), frac)
    return w.astype(np.float32)


def _downsample_kernel(x_ref, wxt_ref, wyg_ref, o_ref):
    # x_ref  : (B_tile, 3*H, W)   channel-stacked rows of B_tile images
    # wxt_ref: (W, 42)            column interpolation matrix (transposed)
    # wyg_ref: (42, 3*H)          luma-weighted row interpolation matrix
    # o_ref  : (B_tile, 42, 42)   output block (N blocked, channel dim squeezed)
    wxt = wxt_ref[...]
    wyg = wyg_ref[...]
    b_tile = x_ref.shape[0]
    for b in range(b_tile):                                    # static unroll
        # Column resize of all 3 channels at once: (3H, W) @ (W, 42) -> (3H, 42)  [MXU]
        t1 = jnp.dot(x_ref[b], wxt, preferred_element_type=jnp.float32)
        # Fused grayscale + row resize: (42, 3H) @ (3H, 42) -> (42, 42)           [MXU]
        o_ref[b] = jnp.dot(wyg, t1,
                           preferred_element_type=jnp.float32).astype(o_ref.dtype)


@jax.jit
def downsample2x_full_y(x: jnp.ndarray) -> jnp.ndarray:
    """x: (N, 3, H, W) float32 -> (N, 1, 42, 42) float32."""
    n, c, h, w = x.shape
    assert c == 3, "Grayscale() expects 3 input channels"

    # Host-side constants: interpolation matrices.
    wy = _bilinear_matrix(OUT_H, h)                                   # (42, H)
    wxt = np.ascontiguousarray(_bilinear_matrix(OUT_W, w).T)          # (W, 42)
    # Fold grayscale channel weights into the row-resize matrix: (42, 3*H).
    wyg = np.concatenate([_R_W * wy, _G_W * wy, _B_W * wy], axis=1)

    # Channel-stacked view: free reshape of contiguous NCHW.
    x3 = x.reshape(n, 3 * h, w)

    # Batch tile: big enough for MB-scale DMAs / overhead amortization, but keep
    # >= 2 grid steps when possible so v7x's two TensorCores both get work.
    b_tile = max(1, min(_MAX_B_TILE, pl.cdiv(n, 2)))
    grid = pl.cdiv(n, b_tile)

    out = pl.pallas_call(
        _downsample_kernel,
        out_shape=jax.ShapeDtypeStruct((n, 1, OUT_H, OUT_W), x.dtype),
        grid_spec=pltpu.PrefetchScalarGridSpec(
            num_scalar_prefetch=0,
            grid=(grid,),
            in_specs=[
                # (b_tile, 3H, W) image block; trailing dims = full dims.
                pl.BlockSpec((b_tile, 3 * h, w), lambda b: (b, 0, 0)),
                # Weights: constant index_map -> DMA'd once, VMEM-resident.
                pl.BlockSpec((w, OUT_W), lambda b: (0, 0)),
                pl.BlockSpec((OUT_H, 3 * h), lambda b: (0, 0)),
            ],
            out_specs=pl.BlockSpec((b_tile, None, OUT_H, OUT_W),
                                   lambda b: (b, 0, 0, 0)),
        ),
        compiler_params=pltpu.CompilerParams(
            dimension_semantics=("parallel",)),
    )(x3, wxt, wyg)
    return out


if __name__ == "__main__":
    key = jax.random.PRNGKey(0)
    # Small Atari-like RGB frames: N=2, C=3, H=W=84 (NCHW, values in [0, 1]).
    x = jax.random.uniform(key, (2, 3, 84, 84), dtype=jnp.float32)

    y = jax.block_until_ready(downsample2x_full_y(x))

    assert y.shape == (2, 1, 42, 42), y.shape
    assert y.dtype == jnp.float32
    assert bool(jnp.all(jnp.isfinite(y)))

    # Pure numpy reference: grayscale then bilinear resize with the same matrices.
    xn = np.asarray(x, dtype=np.float64)
    gray = _R_W * xn[:, 0] + _G_W * xn[:, 1] + _B_W * xn[:, 2]        # (N, H, W)
    wy_ref = _bilinear_matrix(OUT_H, 84).astype(np.float64)
    wx_ref = _bilinear_matrix(OUT_W, 84).astype(np.float64)
    ref = np.einsum('ih,bhw,jw->bij', wy_ref, gray, wx_ref)[:, None]  # (N, 1, 42, 42)
    assert np.allclose(np.asarray(y, dtype=np.float64), ref, rtol=1e-2, atol=1e-2)

    print("KERNEL_OK")
</pallas_src>

<mosaic_0001>
module attributes {stable_mosaic.version = 11 : i64} {
  func.func @_downsample_kernel(%arg0: i32, %arg1: memref<1x252x84xf32, #tpu.memory_space<vmem>>, %arg2: memref<84x42xf32, #tpu.memory_space<vmem>>, %arg3: memref<42x252xf32, #tpu.memory_space<vmem>>, %arg4: memref<1x1x42x42xf32, #tpu.memory_space<vmem>>) attributes {dimension_semantics = [#tpu.dimension_semantics<parallel>], iteration_bounds = array<i64: 2>, scalar_prefetch = 0 : i64, scratch_operands = 0 : i64, tpu.core_type = #tpu.core_type<tc>, window_params = [{transform_indices = @transform_0, window_bounds = array<i64: 1, 252, 84>}, {pipeline_mode = #tpu.pipeline_mode<synchronous>, transform_indices = @transform_1, window_bounds = array<i64: 84, 42>}, {pipeline_mode = #tpu.pipeline_mode<synchronous>, transform_indices = @transform_2, window_bounds = array<i64: 42, 252>}, {transform_indices = @transform_3, window_bounds = array<i64: 1, 1, 42, 42>}]} {
    %c0 = arith.constant 0 : index
    %c0_0 = arith.constant 0 : index
    %0 = vector.load %arg2[%c0, %c0_0] : memref<84x42xf32, #tpu.memory_space<vmem>>, vector<84x42xf32>
    %c0_1 = arith.constant 0 : index
    %c0_2 = arith.constant 0 : index
    %1 = vector.load %arg3[%c0_1, %c0_2] : memref<42x252xf32, #tpu.memory_space<vmem>>, vector<42x252xf32>
    %c0_3 = arith.constant 0 : index
    %c0_4 = arith.constant 0 : index
    %c0_5 = arith.constant 0 : index
    %2 = vector.load %arg1[%c0_3, %c0_4, %c0_5] : memref<1x252x84xf32, #tpu.memory_space<vmem>>, vector<1x252x84xf32>
    %3 = vector.shape_cast %2 : vector<1x252x84xf32> to vector<252x84xf32>
    %cst = arith.constant dense<0.000000e+00> : vector<252x42xf32>
    %4 = tpu.matmul %3, %0, %cst {dimension_numbers = #tpu.dot_dimension_numbers<[1], [0], [0], [1], [0, 0, 1, 1], [], []>} : vector<252x84xf32>, vector<84x42xf32>, vector<252x42xf32> -> vector<252x42xf32>
    %cst_6 = arith.constant dense<0.000000e+00> : vector<42x42xf32>
    %5 = tpu.matmul %1, %4, %cst_6 {dimension_numbers = #tpu.dot_dimension_numbers<[1], [0], [0], [1], [0, 0, 1, 1], [], []>} : vector<42x252xf32>, vector<252x42xf32>, vector<42x42xf32> -> vector<42x42xf32>
    %c0_7 = arith.constant 0 : index
    %c0_8 = arith.constant 0 : index
    %c0_9 = arith.constant 0 : index
    %c0_10 = arith.constant 0 : index
    %6 = vector.load %arg4[%c0_7, %c0_8, %c0_9, %c0_10] : memref<1x1x42x42xf32, #tpu.memory_space<vmem>>, vector<1x1x42x42xf32>
    %7 = vector.shape_cast %6 : vector<1x1x42x42xf32> to vector<42x42xf32>
    %8 = vector.shape_cast %5 : vector<42x42xf32> to vector<1x1x42x42xf32>
    tpu.vector_store %arg4[%c0_7, %c0_8, %c0_9, %c0_10], %8 {strides = array<i32>} : memref<1x1x42x42xf32, #tpu.memory_space<vmem>>, vector<1x1x42x42xf32>,
    return
  }
  func.func @transform_0(%arg0: i32) -> (i32, i32, i32) {
    %c0_i32 = arith.constant 0 : i32
    %c0_i32_0 = arith.constant 0 : i32
    %c0_i32_1 = arith.constant 0 : i32
    return %arg0, %c0_i32, %c0_i32_0 : i32, i32, i32
  }
  func.func @transform_1(%arg0: i32) -> (i32, i32) {
    %c0_i32 = arith.constant 0 : i32
    %c0_i32_0 = arith.constant 0 : i32
    %c0_i32_1 = arith.constant 0 : i32
    return %c0_i32, %c0_i32_0 : i32, i32
  }
  func.func @transform_2(%arg0: i32) -> (i32, i32) {
    %c0_i32 = arith.constant 0 : i32
    %c0_i32_0 = arith.constant 0 : i32
    %c0_i32_1 = arith.constant 0 : i32
    return %c0_i32, %c0_i32_0 : i32, i32
  }
  func.func @transform_3(%arg0: i32) -> (i32, i32, i32, i32) {
    %c0_i32 = arith.constant 0 : i32
    %c0_i32_0 = arith.constant 0 : i32
    %c0_i32_1 = arith.constant 0 : i32
    %c0_i32_2 = arith.constant 0 : i32
    return %arg0, %c0_i32, %c0_i32_0, %c0_i32_1 : i32, i32, i32, i32
  }
}

</mosaic_0001>

<llo_original>
// kernel: downsample2x_full_y.1
$region0: #{downsample2x_full_y.1}
  #allocation0 [shape = 'u32[]', space=smem, size = 0x4, offset = 0x4, fixed_abs, tag = 'smem constant byte address 0x4 - core index']
  #allocation1 [shape = 'u32[144,128]{1,0:T(1,128)}', space=vmem, size = 0x12000, scoped, tag = 'internal scratch']
  %s0 = inlined_call_operand.vmem [shape: f32[2,252,84], index: 0, kind: input, shape index: {}]
  %s1 = inlined_call_operand.vmem [shape: f32[84,42], index: 1, kind: input, shape index: {}]
  %s2 = inlined_call_operand.vmem [shape: f32[42,252], index: 2, kind: input, shape index: {}]
  %s3 = inlined_call_operand.vmem [shape: f32[2,1,42,42], index: 3, kind: output, shape index: {}]
  %s4 = sld [smem:[#allocation0]]
  $region45: #{downsample2x_full_y.1} parent=0
    _
  %s6 = ssub.s32 1, %s4
  %s7 = scalar_select 0, %s6, %s4
  loop: start=0, step=1, limit=4
  $region2: #{downsample2x_full_y.1} parent=0 // loop_pre_header
    _
  $region3: #{downsample2x_full_y.1} parent=0 // loop_header
    %s9 = sphi 0, %s13
    %p10 = scmp.ge.s32.totalorder %s9, 4
    %s19 = sphi 0, %s21
    %s22 = sphi 0, %s19
    %s23 = sphi 0, %s22
    %s39 = sphi 0, %s23
    %s43 = sphi 0, %s43
    %s45 = sphi 0, %s43
    %s46 = sphi 0, %s45
    %s60 = sphi 0, %s46
    %s64 = sphi 0, %s64
    %s66 = sphi 0, %s64
    %s67 = sphi 0, %s66
    %s81 = sphi 0, %s67
    %s87 = sphi 0, %s89
    %s90 = sphi 0, %s87
    %s91 = sphi 0, %s90
    %s107 = sphi 0, %s91
  $region4: #{downsample2x_full_y.1} parent=0 // loop_header_branch
    %12 = sbr.rel (%p10) target = $region8
  $region5: #{downsample2x_full_y.1} parent=0 // loop_body
    %s14 = ssub.s32 %s9, 1
    %s15 = ssub.s32 %s9, 2
    %s16 = sadd.s32 %s9, 1
    %s17 = ssub.s32 %s9, %s16
    %p18 = scmp.eq.s32.totalorder %s17, 0
    %s20 = sadd.s32 %s19, 1
    %s21 = scalar_select %p18, %s19, %s20
    %p24 = pneg %p18
    %p25 = scmp.eq.s32.totalorder %s9, 1
    %p26 = por %p24, %p25
    %p27 = scmp.ne.s32.totalorder %s19, %s22
    %p28 = scmp.eq.s32.totalorder %s9, 0
    %p29 = por %p27, %p28
    %p30 = scmp.ne.s32.totalorder %s19, %s22
    %p31 = scmp.eq.s32.totalorder %s14, 1
    %p32 = por %p30, %p31
    %p33 = scmp.ne.s32.totalorder %s22, %s23
    %p34 = scmp.eq.s32.totalorder %s14, 0
    %p35 = por %p33, %p34
    %p36 = scmp.ne.s32.totalorder %s22, %s23
    %p37 = scmp.eq.s32.totalorder %s15, 1
    %p38 = por %p36, %p37
    %p40 = scmp.ne.s32.totalorder %s23, %s39
    %p41 = scmp.eq.s32.totalorder %s15, 0
    %p42 = por %p40, %p41
    %s44 = sadd.s32 %s43, 1
    %p47 = scmp.eq.s32.totalorder %s9, 1
    %p48 = scmp.ne.s32.totalorder %s43, %s45
    %p49 = scmp.eq.s32.totalorder %s9, 0
    %p50 = por %p48, %p49
    %p51 = scmp.ne.s32.totalorder %s43, %s45
    %p52 = scmp.eq.s32.totalorder %s14, 1
    %p53 = por %p51, %p52
    %p54 = scmp.ne.s32.totalorder %s45, %s46
    %p55 = scmp.eq.s32.totalorder %s14, 0
    %p56 = por %p54, %p55
    %p57 = scmp.ne.s32.totalorder %s45, %s46
    %p58 = scmp.eq.s32.totalorder %s15, 1
    %p59 = por %p57, %p58
    %p61 = scmp.ne.s32.totalorder %s46, %s60
    %p62 = scmp.eq.s32.totalorder %s15, 0
    %p63 = por %p61, %p62
    %s65 = sadd.s32 %s64, 1
    %p68 = scmp.eq.s32.totalorder %s9, 1
    %p69 = scmp.ne.s32.totalorder %s64, %s66
    %p70 = scmp.eq.s32.totalorder %s9, 0
    %p71 = por %p69, %p70
    %p72 = scmp.ne.s32.totalorder %s64, %s66
    %p73 = scmp.eq.s32.totalorder %s14, 1
    %p74 = por %p72, %p73
    %p75 = scmp.ne.s32.totalorder %s66, %s67
    %p76 = scmp.eq.s32.totalorder %s14, 0
    %p77 = por %p75, %p76
    %p78 = scmp.ne.s32.totalorder %s66, %s67
    %p79 = scmp.eq.s32.totalorder %s15, 1
    %p80 = por %p78, %p79
    %p82 = scmp.ne.s32.totalorder %s67, %s81
    %p83 = scmp.eq.s32.totalorder %s15, 0
    %p84 = por %p82, %p83
    %s85 = ssub.s32 %s9, %s16
    %p86 = scmp.eq.s32.totalorder %s85, 0
    %s88 = sadd.s32 %s87, 1
    %s89 = scalar_select %p86, %s87, %s88
    %p92 = pneg %p86
    %p93 = scmp.eq.s32.totalorder %s9, 1
    %p94 = por %p92, %p93
    %p95 = scmp.ne.s32.totalorder %s87, %s90
    %p96 = scmp.eq.s32.totalorder %s9, 0
    %p97 = por %p95, %p96
    %p98 = scmp.ne.s32.totalorder %s87, %s90
    %p99 = scmp.eq.s32.totalorder %s14, 1
    %p100 = por %p98, %p99
    %p101 = scmp.ne.s32.totalorder %s90, %s91
    %p102 = scmp.eq.s32.totalorder %s14, 0
    %p103 = por %p101, %p102
    %p104 = scmp.ne.s32.totalorder %s90, %s91
    %p105 = scmp.eq.s32.totalorder %s15, 1
    %p106 = por %p104, %p105
    %p108 = scmp.ne.s32.totalorder %s91, %s107
    %p109 = scmp.eq.s32.totalorder %s15, 0
    %p110 = por %p108, %p109
    %p111 = scmp.le.s32.totalorder 1, %s9
    %p112 = scmp.lt.s32.totalorder %s9, 3
    %p113 = pnand %p111, %p112
    %p114 = pneg %p113
    // Predicated region
    $region9: #{downsample2x_full_y.1} parent=5 // pred_check
      _
    $region10: #{downsample2x_full_y.1} parent=5 // pred_check_branch
      %116 = sbr.rel (%p113) target = $region12
    $region11: #{downsample2x_full_y.1} parent=5 // pred_region
      %s117 = ssub.s32 %s9, 1
      // Predicated region
      $region13: #{downsample2x_full_y.1} parent=11 // pred_check
        %p118 = pneg %p56
      $region14: #{downsample2x_full_y.1} parent=11 // pred_check_branch
        %120 = sbr.rel (%p118) target = $region16
      $region15: #{downsample2x_full_y.1} parent=11 // pred_region
        _
      $region16: #{downsample2x_full_y.1} parent=11 // pred_fallthru
        _
      // Predicated region
      $region17: #{downsample2x_full_y.1} parent=11 // pred_check
        %p121 = pneg %p77
      $region18: #{downsample2x_full_y.1} parent=11 // pred_check_branch
        %123 = sbr.rel (%p121) target = $region20
      $region19: #{downsample2x_full_y.1} parent=11 // pred_region
        _
      $region20: #{downsample2x_full_y.1} parent=11 // pred_fallthru
        _
    $region12: #{downsample2x_full_y.1} parent=5 // pred_fallthru
      _
    %p124 = scmp.lt.s32.totalorder %s9, 2
    // Predicated region
    $region21: #{downsample2x_full_y.1} parent=5 // pred_check
      %p125 = pneg %p124
    $region22: #{downsample2x_full_y.1} parent=5 // pred_check_branch
      %127 = sbr.rel (%p125) target = $region24
    $region23: #{downsample2x_full_y.1} parent=5 // pred_region
      // Predicated region
      $region25: #{downsample2x_full_y.1} parent=23 // pred_check
        %p128 = pneg %p29
      $region26: #{downsample2x_full_y.1} parent=23 // pred_check_branch
        %130 = sbr.rel (%p128) target = $region28
      $region27: #{downsample2x_full_y.1} parent=23 // pred_region
        %p131 = scmp.lt.s32.totalorder %s9, 1
        %s132 = scalar_select %p131, %s9, 1
        %s133 = smul.addr %s132, 32
        %s134 = smul.addr %s133, 8
        %s135 = scalar_lea.vmem %s0, %s134
      $region28: #{downsample2x_full_y.1} parent=23 // pred_fallthru
        _
    $region24: #{downsample2x_full_y.1} parent=5 // pred_fallthru
      _
    %p136 = scmp.le.s32.totalorder 1, %s9
    %p137 = scmp.lt.s32.totalorder %s9, 3
    %p138 = pnand %p136, %p137
    %p139 = pneg %p138
    // Predicated region
    $region29: #{downsample2x_full_y.1} parent=5 // pred_check
      _
    $region30: #{downsample2x_full_y.1} parent=5 // pred_check_branch
      %141 = sbr.rel (%p138) target = $region32
    $region31: #{downsample2x_full_y.1} parent=5 // pred_region
      %s142 = ssub.s32 %s9, 1
      %p143 = scmp.lt.s32.totalorder %s14, 1
      %s144 = scalar_select %p143, %s14, 1
      %s145 = smul.addr %s144, 32
      %s146 = smul.addr %s145, 8
      %s147 = scalar_lea.vmem %s0, %s146
      %p148 = pneg %p35
      %p149 = pneg %p32
      %p150 = pneg %p56
      %p151 = pneg %p53
      %p152 = pneg %p77
      %p153 = pneg %p74
      %p154 = pneg %p103
      %p155 = pneg %p100
      %p156 = scmp.lt.s32.totalorder %s14, 1
      %s157 = scalar_select %p156, %s14, 1
      %s158 = smul.addr %s157, 6
      %s159 = smul.addr %s158, 8
      %s160 = scalar_lea.vmem %s3, %s159
      %p161 = scmp.lt.s32.totalorder %s14, 1
      %s162 = scalar_select %p161, %s14, 1
      %s163 = smul.addr %s162, 32
      %s164 = smul.addr %s163, 8
      %s165 = scalar_lea.vmem %s0, %s164
      %p166 = scmp.lt.s32.totalorder %s14, 1
      %s167 = scalar_select %p166, %s14, 1
      %s168 = smul.addr %s167, 6
      %s169 = smul.addr %s168, 8
      %s170 = scalar_lea.vmem %s3, %s169
      %v171 = vld [vmem:[%s1] sm:$0xff]
      %v172 = vld [vmem:[%s1 + $0x8] sm:$0xff]
      %v173 = vld [vmem:[%s1 + $0x10] sm:$0xff]
      %v174 = vld [vmem:[%s1 + $0x18] sm:$0xff]
      %v175 = vld [vmem:[%s1 + $0x20] sm:$0xff]
      %v176 = vld [vmem:[%s1 + $0x28] sm:$0xff]
      %v177 = vld [vmem:[%s1 + $0x30] sm:$0xff]
      %v178 = vld [vmem:[%s1 + $0x38] sm:$0xff]
      %v179 = vld [vmem:[%s1 + $0x40] sm:$0xff]
      %v180 = vld [vmem:[%s1 + $0x48] sm:$0xff]
      %v181 = vld [vmem:[%s1 + $0x50] sm:$0xf]
      %v182 = vld [vmem:[%s2] sm:$0xff]
      %v183 = vld [vmem:[%s2 + $0x8] sm:$0xff]
      %v184 = vld [vmem:[%s2 + $0x10] sm:$0xff]
      %v185 = vld [vmem:[%s2 + $0x18] sm:$0xff]
      %v186 = vld [vmem:[%s2 + $0x20] sm:$0xff]
      %v187 = vld [vmem:[%s2 + $0x28] sm:$0xff]
      %v188 = vld [vmem:[%s2 + $0x30] sm:$0xff]
      %v189 = vld [vmem:[%s2 + $0x38] sm:$0xff]
      %v190 = vld [vmem:[%s2 + $0x40] sm:$0xff]
      %v191 = vld [vmem:[%s2 + $0x48] sm:$0xff]
      %v192 = vld [vmem:[%s2 + $0x50] sm:$0x3]
      %v193 = vld [vmem:[%s2 + $0x58] sm:$0x3]
      %v194 = vld [vmem:[%s165] sm:$0xff]
      %v195 = vld [vmem:[%s165 + $0x8] sm:$0xff]
      %v196 = vld [vmem:[%s165 + $0x10] sm:$0xff]
      %v197 = vld [vmem:[%s165 + $0x18] sm:$0xff]
      %v198 = vld [vmem:[%s165 + $0x20] sm:$0xff]
      %v199 = vld [vmem:[%s165 + $0x28] sm:$0xff]
      %v200 = vld [vmem:[%s165 + $0x30] sm:$0xff]
      %v201 = vld [vmem:[%s165 + $0x38] sm:$0xff]
      %v202 = vld [vmem:[%s165 + $0x40] sm:$0xff]
      %v203 = vld [vmem:[%s165 + $0x48] sm:$0xff]
      %v204 = vld [vmem:[%s165 + $0x50] sm:$0xff]
      %v205 = vld [vmem:[%s165 + $0x58] sm:$0xff]
      %v206 = vld [vmem:[%s165 + $0x60] sm:$0xff]
      %v207 = vld [vmem:[%s165 + $0x68] sm:$0xff]
      %v208 = vld [vmem:[%s165 + $0x70] sm:$0xff]
      %v209 = vld [vmem:[%s165 + $0x78] sm:$0xff]
      %v210 = vld [vmem:[%s165 + $0x80] sm:$0xff]
      %v211 = vld [vmem:[%s165 + $0x88] sm:$0xff]
      %v212 = vld [vmem:[%s165 + $0x90] sm:$0xff]
      %v213 = vld [vmem:[%s165 + $0x98] sm:$0xff]
      %v214 = vld [vmem:[%s165 + $0xa0] sm:$0xff]
      %v215 = vld [vmem:[%s165 + $0xa8] sm:$0xff]
      %v216 = vld [vmem:[%s165 + $0xb0] sm:$0xff]
      %v217 = vld [vmem:[%s165 + $0xb8] sm:$0xff]
      %v218 = vld [vmem:[%s165 + $0xc0] sm:$0xff]
      %v219 = vld [vmem:[%s165 + $0xc8] sm:$0xff]
      %v220 = vld [vmem:[%s165 + $0xd0] sm:$0xff]
      %v221 = vld [vmem:[%s165 + $0xd8] sm:$0xff]
      %v222 = vld [vmem:[%s165 + $0xe0] sm:$0xff]
      %v223 = vld [vmem:[%s165 + $0xe8] sm:$0xff]
      %v224 = vld [vmem:[%s165 + $0xf0] sm:$0xff]
      %v225 = vld [vmem:[%s165 + $0xf8] sm:$0xf]
      %vm226 = vcmask 687104
      %v228 = vsel %vm226, %v194, 0
      %v231 = vsel %vm226, %v195, 0
      %v234 = vsel %vm226, %v196, 0
      %v237 = vsel %vm226, %v197, 0
      %v240 = vsel %vm226, %v198, 0
      %v243 = vsel %vm226, %v199, 0
      %v246 = vsel %vm226, %v200, 0
      %v249 = vsel %vm226, %v201, 0
      %v252 = vsel %vm226, %v202, 0
      %v255 = vsel %vm226, %v203, 0
      %v258 = vsel %vm226, %v204, 0
      %v261 = vsel %vm226, %v205, 0
      %v264 = vsel %vm226, %v206, 0
      %v267 = vsel %vm226, %v207, 0
      %v270 = vsel %vm226, %v208, 0
      %v273 = vsel %vm226, %v209, 0
      %v276 = vsel %vm226, %v210, 0
      %v279 = vsel %vm226, %v211, 0
      %v282 = vsel %vm226, %v212, 0
      %v285 = vsel %vm226, %v213, 0
      %v288 = vsel %vm226, %v214, 0
      %v291 = vsel %vm226, %v215, 0
      %v294 = vsel %vm226, %v216, 0
      %v297 = vsel %vm226, %v217, 0
      %v300 = vsel %vm226, %v218, 0
      %v303 = vsel %vm226, %v219, 0
      %v306 = vsel %vm226, %v220, 0
      %v309 = vsel %vm226, %v221, 0
      %v312 = vsel %vm226, %v222, 0
      %v315 = vsel %vm226, %v223, 0
      %v318 = vsel %vm226, %v224, 0
      %v321 = vsel %vm226, %v225, 0
      %vm323 = vcmask 1043456
      %v325 = vsel %vm323, %v181, 0
      %327 = vmatprep.subr.mxu0 0.0
      %328 = vmatpush1.msra.mxu0 0.0
      %329 = vmatprep.subr.mxu0 0.0
      %330 = vmatpush1.msra.mxu0 0.0
      %331 = vmatprep.subr.mxu0 0.0
      %332 = vmatpush1.msra.mxu0 0.0
      %333 = vmatprep.subr.mxu0 0.0
      %334 = vmatpush1.msra.mxu0 0.0
      %335 = vmatprep.subr.mxu0 0.0
      %336 = vmatpush1.msra.mxu0 0.0
      %337 = vmatprep.subr.mxu0 0.0
      %338 = vmatpush1.msra.mxu0 %v325
      %339 = vmatprep.subr.mxu0 0.0
      %340 = vmatpush1.msra.mxu0 %v180
      %341 = vmatprep.subr.mxu0 0.0
      %342 = vmatpush1.msra.mxu0 %v179
      %343 = vmatprep.subr.mxu0 0.0
      %344 = vmatpush1.msra.mxu0 %v178
      %345 = vmatprep.subr.mxu0 0.0
      %346 = vmatpush1.msra.mxu0 %v177
      %347 = vmatprep.subr.mxu0 0.0
      %348 = vmatpush1.msra.mxu0 %v176
      %349 = vmatprep.subr.mxu0 0.0
      %350 = vmatpush1.msra.mxu0 %v175
      %351 = vmatprep.subr.mxu0 0.0
      %352 = vmatpush1.msra.mxu0 %v174
      %353 = vmatprep.subr.mxu0 0.0
      %354 = vmatpush1.msra.mxu0 %v173
      %355 = vmatprep.subr.mxu0 0.0
      %356 = vmatpush1.msra.mxu0 %v172
      %357 = vmatprep.subr.mxu0 0.0
      %358 = vmatpush1.msra.mxu0 %v171
      %359 = vmatprep.subr.mxu0 0.0
      %360 = vmatpush2.msra.mxu0 0.0
      %361 = vmatprep.subr.mxu0 0.0
      %362 = vmatpush2.msra.mxu0 0.0
      %363 = vmatprep.subr.mxu0 0.0
      %364 = vmatpush2.msra.mxu0 0.0
      %365 = vmatprep.subr.mxu0 0.0
      %366 = vmatpush2.msra.mxu0 0.0
      %367 = vmatprep.subr.mxu0 0.0
      %368 = vmatpush2.msra.mxu0 0.0
      %369 = vmatprep.subr.mxu0 0.0
      %370 = vmatpush2.msra.mxu0 0.0
      %371 = vmatprep.subr.mxu0 0.0
      %372 = vmatpush2.msra.mxu0 0.0
      %373 = vmatprep.subr.mxu0 0.0
      %374 = vmatpush2.msra.mxu0 0.0
      %375 = vmatprep.subr.mxu0 0.0
      %376 = vmatpush2.msra.mxu0 0.0
      %377 = vmatprep.subr.mxu0 0.0
      %378 = vmatpush2.msra.mxu0 0.0
      %379 = vmatprep.subr.mxu0 0.0
      %380 = vmatpush2.msra.mxu0 0.0
      %381 = vmatprep.subr.mxu0 0.0
      %382 = vmatpush2.msra.mxu0 0.0
      %383 = vmatprep.subr.mxu0 0.0
      %384 = vmatpush2.msra.mxu0 0.0
      %385 = vmatprep.subr.mxu0 0.0
      %386 = vmatpush2.msra.mxu0 0.0
      %387 = vmatprep.subr.mxu0 0.0
      %388 = vmatpush2.msra.mxu0 0.0
      %389 = vmatprep.subr.mxu0 0.0
      %390 = vmatpush2.msra.mxu0 0.0
      %391 = vmatprep.mubr.f32.mxu0 0.0
      %392 = vmatmul.mubr.f32.gmra.mxu0 %v228
      %v393 = vpop.f32.mrf.mxu0
      %v394 = vadd.f32 0.0, %v393
      %v395 = vpop.f32.mrf.mxu0
      %396 = vmatprep.mubr.f32.mxu0 0.0
      %397 = vmatmul.mubr.f32.gmra.mxu0 %v231
      %v398 = vpop.f32.mrf.mxu0
      %v399 = vadd.f32 0.0, %v398
      %v400 = vpop.f32.mrf.mxu0
      %401 = vmatprep.mubr.f32.mxu0 0.0
      %402 = vmatmul.mubr.f32.gmra.mxu0 %v234
      %v403 = vpop.f32.mrf.mxu0
      %v404 = vadd.f32 0.0, %v403
      %v405 = vpop.f32.mrf.mxu0
      %406 = vmatprep.mubr.f32.mxu0 0.0
      %407 = vmatmul.mubr.f32.gmra.mxu0 %v237
      %v408 = vpop.f32.mrf.mxu0
      %v409 = vadd.f32 0.0, %v408
      %v410 = vpop.f32.mrf.mxu0
      %411 = vmatprep.mubr.f32.mxu0 0.0
      %412 = vmatmul.mubr.f32.gmra.mxu0 %v240
      %v413 = vpop.f32.mrf.mxu0
      %v414 = vadd.f32 0.0, %v413
      %v415 = vpop.f32.mrf.mxu0
      %416 = vmatprep.mubr.f32.mxu0 0.0
      %417 = vmatmul.mubr.f32.gmra.mxu0 %v243
      %v418 = vpop.f32.mrf.mxu0
      %v419 = vadd.f32 0.0, %v418
      %v420 = vpop.f32.mrf.mxu0
      %421 = vmatprep.mubr.f32.mxu0 0.0
      %422 = vmatmul.mubr.f32.gmra.mxu0 %v246
      %v423 = vpop.f32.mrf.mxu0
      %v424 = vadd.f32 0.0, %v423
      %v425 = vpop.f32.mrf.mxu0
      %426 = vmatprep.mubr.f32.mxu0 0.0
      %427 = vmatmul.mubr.f32.gmra.mxu0 %v249
      %v428 = vpop.f32.mrf.mxu0
      %v429 = vadd.f32 0.0, %v428
      %v430 = vpop.f32.mrf.mxu0
      %431 = vmatprep.mubr.f32.mxu0 0.0
      %432 = vmatmul.mubr.f32.gmra.mxu0 %v252
      %v433 = vpop.f32.mrf.mxu0
      %v434 = vadd.f32 0.0, %v433
      %v435 = vpop.f32.mrf.mxu0
      %436 = vmatprep.mubr.f32.mxu0 0.0
      %437 = vmatmul.mubr.f32.gmra.mxu0 %v255
      %v438 = vpop.f32.mrf.mxu0
      %v439 = vadd.f32 0.0, %v438
      %v440 = vpop.f32.mrf.mxu0
      %441 = vmatprep.mubr.f32.mxu0 0.0
      %442 = vmatmul.mubr.f32.gmra.mxu0 %v258
      %v443 = vpop.f32.mrf.mxu0
      %v444 = vadd.f32 0.0, %v443
      %v445 = vpop.f32.mrf.mxu0
      %446 = vmatprep.mubr.f32.mxu0 0.0
      %447 = vmatmul.mubr.f32.gmra.mxu0 %v261
      %v448 = vpop.f32.mrf.mxu0
      %v449 = vadd.f32 0.0, %v448
      %v450 = vpop.f32.mrf.mxu0
      %451 = vmatprep.mubr.f32.mxu0 0.0
      %452 = vmatmul.mubr.f32.gmra.mxu0 %v264
      %v453 = vpop.f32.mrf.mxu0
      %v454 = vadd.f32 0.0, %v453
      %v455 = vpop.f32.mrf.mxu0
      %456 = vmatprep.mubr.f32.mxu0 0.0
      %457 = vmatmul.mubr.f32.gmra.mxu0 %v267
      %v458 = vpop.f32.mrf.mxu0
      %v459 = vadd.f32 0.0, %v458
      %v460 = vpop.f32.mrf.mxu0
      %461 = vmatprep.mubr.f32.mxu0 0.0
      %462 = vmatmul.mubr.f32.gmra.mxu0 %v270
      %v463 = vpop.f32.mrf.mxu0
      %v464 = vadd.f32 0.0, %v463
      %v465 = vpop.f32.mrf.mxu0
      %466 = vmatprep.mubr.f32.mxu0 0.0
      %467 = vmatmul.mubr.f32.gmra.mxu0 %v273
      %v468 = vpop.f32.mrf.mxu0
      %v469 = vadd.f32 0.0, %v468
      %v470 = vpop.f32.mrf.mxu0
      %471 = vmatprep.mubr.f32.mxu0 0.0
      %472 = vmatmul.mubr.f32.gmra.mxu0 %v276
      %v473 = vpop.f32.mrf.mxu0
      %v474 = vadd.f32 0.0, %v473
      %v475 = vpop.f32.mrf.mxu0
      %476 = vmatprep.mubr.f32.mxu0 0.0
      %477 = vmatmul.mubr.f32.gmra.mxu0 %v279
      %v478 = vpop.f32.mrf.mxu0
      %v479 = vadd.f32 0.0, %v478
      %v480 = vpop.f32.mrf.mxu0
      %481 = vmatprep.mubr.f32.mxu0 0.0
      %482 = vmatmul.mubr.f32.gmra.mxu0 %v282
      %v483 = vpop.f32.mrf.mxu0
      %v484 = vadd.f32 0.0, %v483
      %v485 = vpop.f32.mrf.mxu0
      %486 = vmatprep.mubr.f32.mxu0 0.0
      %487 = vmatmul.mubr.f32.gmra.mxu0 %v285
      %v488 = vpop.f32.mrf.mxu0
      %v489 = vadd.f32 0.0, %v488
      %v490 = vpop.f32.mrf.mxu0
      %491 = vmatprep.mubr.f32.mxu0 0.0
      %492 = vmatmul.mubr.f32.gmra.mxu0 %v288
      %v493 = vpop.f32.mrf.mxu0
      %v494 = vadd.f32 0.0, %v493
      %v495 = vpop.f32.mrf.mxu0
      %496 = vmatprep.mubr.f32.mxu0 0.0
      %497 = vmatmul.mubr.f32.gmra.mxu0 %v291
      %v498 = vpop.f32.mrf.mxu0
      %v499 = vadd.f32 0.0, %v498
      %v500 = vpop.f32.mrf.mxu0
      %501 = vmatprep.mubr.f32.mxu0 0.0
      %502 = vmatmul.mubr.f32.gmra.mxu0 %v294
      %v503 = vpop.f32.mrf.mxu0
      %v504 = vadd.f32 0.0, %v503
      %v505 = vpop.f32.mrf.mxu0
      %506 = vmatprep.mubr.f32.mxu0 0.0
      %507 = vmatmul.mubr.f32.gmra.mxu0 %v297
      %v508 = vpop.f32.mrf.mxu0
      %v509 = vadd.f32 0.0, %v508
      %v510 = vpop.f32.mrf.mxu0
      %511 = vmatprep.mubr.f32.mxu0 0.0
      %512 = vmatmul.mubr.f32.gmra.mxu0 %v300
      %v513 = vpop.f32.mrf.mxu0
      %v514 = vadd.f32 0.0, %v513
      %v515 = vpop.f32.mrf.mxu0
      %516 = vmatprep.mubr.f32.mxu0 0.0
      %517 = vmatmul.mubr.f32.gmra.mxu0 %v303
      %v518 = vpop.f32.mrf.mxu0
      %v519 = vadd.f32 0.0, %v518
      %v520 = vpop.f32.mrf.mxu0
      %521 = vmatprep.mubr.f32.mxu0 0.0
      %522 = vmatmul.mubr.f32.gmra.mxu0 %v306
      %v523 = vpop.f32.mrf.mxu0
      %v524 = vadd.f32 0.0, %v523
      %v525 = vpop.f32.mrf.mxu0
      %526 = vmatprep.mubr.f32.mxu0 0.0
      %527 = vmatmul.mubr.f32.gmra.mxu0 %v309
      %v528 = vpop.f32.mrf.mxu0
      %v529 = vadd.f32 0.0, %v528
      %v530 = vpop.f32.mrf.mxu0
      %531 = vmatprep.mubr.f32.mxu0 0.0
      %532 = vmatmul.mubr.f32.gmra.mxu0 %v312
      %v533 = vpop.f32.mrf.mxu0
      %v534 = vadd.f32 0.0, %v533
      %v535 = vpop.f32.mrf.mxu0
      %536 = vmatprep.mubr.f32.mxu0 0.0
      %537 = vmatmul.mubr.f32.gmra.mxu0 %v315
      %v538 = vpop.f32.mrf.mxu0
      %v539 = vadd.f32 0.0, %v538
      %v540 = vpop.f32.mrf.mxu0
      %541 = vmatprep.mubr.f32.mxu0 0.0
      %542 = vmatmul.mubr.f32.gmra.mxu0 %v318
      %v543 = vpop.f32.mrf.mxu0
      %v544 = vadd.f32 0.0, %v543
      %v545 = vpop.f32.mrf.mxu0
      %546 = vmatprep.mubr.f32.mxu0 0.0
      %547 = vmatmul.mubr.f32.gmra.mxu0 %v321
      %v548 = vpop.f32.mrf.mxu0
      %v549 = vadd.f32 0.0, %v548
      %v550 = vpop.f32.mrf.mxu0
      %551 = vdwg.mxu0
      %vm552 = vcmask 1014784
      %v554 = vsel %vm552, %v183, 0
      %v557 = vsel %vm552, %v185, 0
      %v560 = vsel %vm552, %v187, 0
      %v563 = vsel %vm552, %v189, 0
      %v566 = vsel %vm552, %v191, 0
      %v569 = vsel %vm552, %v193, 0
      %v572 = vsel %vm323, %v549, 0
      %574 = vmatprep.subr.mxu0 0.0
      %575 = vmatpush1.msra.mxu0 %v469
      %576 = vmatprep.subr.mxu0 0.0
      %577 = vmatpush1.msra.mxu0 %v464
      %578 = vmatprep.subr.mxu0 0.0
      %579 = vmatpush1.msra.mxu0 %v459
      %580 = vmatprep.subr.mxu0 0.0
      %581 = vmatpush1.msra.mxu0 %v454
      %582 = vmatprep.subr.mxu0 0.0
      %583 = vmatpush1.msra.mxu0 %v449
      %584 = vmatprep.subr.mxu0 0.0
      %585 = vmatpush1.msra.mxu0 %v444
      %586 = vmatprep.subr.mxu0 0.0
      %587 = vmatpush1.msra.mxu0 %v439
      %588 = vmatprep.subr.mxu0 0.0
      %589 = vmatpush1.msra.mxu0 %v434
      %590 = vmatprep.subr.mxu0 0.0
      %591 = vmatpush1.msra.mxu0 %v429
      %592 = vmatprep.subr.mxu0 0.0
      %593 = vmatpush1.msra.mxu0 %v424
      %594 = vmatprep.subr.mxu0 0.0
      %595 = vmatpush1.msra.mxu0 %v419
      %596 = vmatprep.subr.mxu0 0.0
      %597 = vmatpush1.msra.mxu0 %v414
      %598 = vmatprep.subr.mxu0 0.0
      %599 = vmatpush1.msra.mxu0 %v409
      %600 = vmatprep.subr.mxu0 0.0
      %601 = vmatpush1.msra.mxu0 %v404
      %602 = vmatprep.subr.mxu0 0.0
      %603 = vmatpush1.msra.mxu0 %v399
      %604 = vmatprep.subr.mxu0 0.0
      %605 = vmatpush1.msra.mxu0 %v394
      %606 = vmatprep.subr.mxu0 0.0
      %607 = vmatpush2.msra.mxu0 %v572
      %608 = vmatprep.subr.mxu0 0.0
      %609 = vmatpush2.msra.mxu0 %v544
      %610 = vmatprep.subr.mxu0 0.0
      %611 = vmatpush2.msra.mxu0 %v539
      %612 = vmatprep.subr.mxu0 0.0
      %613 = vmatpush2.msra.mxu0 %v534
      %614 = vmatprep.subr.mxu0 0.0
      %615 = vmatpush2.msra.mxu0 %v529
      %616 = vmatprep.subr.mxu0 0.0
      %617 = vmatpush2.msra.mxu0 %v524
      %618 = vmatprep.subr.mxu0 0.0
      %619 = vmatpush2.msra.mxu0 %v519
      %620 = vmatprep.subr.mxu0 0.0
      %621 = vmatpush2.msra.mxu0 %v514
      %622 = vmatprep.subr.mxu0 0.0
      %623 = vmatpush2.msra.mxu0 %v509
      %624 = vmatprep.subr.mxu0 0.0
      %625 = vmatpush2.msra.mxu0 %v504
      %626 = vmatprep.subr.mxu0 0.0
      %627 = vmatpush2.msra.mxu0 %v499
      %628 = vmatprep.subr.mxu0 0.0
      %629 = vmatpush2.msra.mxu0 %v494
      %630 = vmatprep.subr.mxu0 0.0
      %631 = vmatpush2.msra.mxu0 %v489
      %632 = vmatprep.subr.mxu0 0.0
      %633 = vmatpush2.msra.mxu0 %v484
      %634 = vmatprep.subr.mxu0 0.0
      %635 = vmatpush2.msra.mxu0 %v479
      %636 = vmatprep.subr.mxu0 0.0
      %637 = vmatpush2.msra.mxu0 %v474
      %638 = vmatprep.mubr.f32.mxu0 %v554
      %639 = vmatmul.mubr.f32.gmra.mxu0 %v182
      %v640 = vpop.f32.mrf.mxu0
      %v641 = vadd.f32 0.0, %v640
      %v642 = vpop.f32.mrf.mxu0
      %643 = vmatprep.mubr.f32.mxu0 %v557
      %644 = vmatmul.mubr.f32.gmra.mxu0 %v184
      %v645 = vpop.f32.mrf.mxu0
      %v646 = vadd.f32 0.0, %v645
      %v647 = vpop.f32.mrf.mxu0
      %648 = vmatprep.mubr.f32.mxu0 %v560
      %649 = vmatmul.mubr.f32.gmra.mxu0 %v186
      %v650 = vpop.f32.mrf.mxu0
      %v651 = vadd.f32 0.0, %v650
      %v652 = vpop.f32.mrf.mxu0
      %653 = vmatprep.mubr.f32.mxu0 %v563
      %654 = vmatmul.mubr.f32.gmra.mxu0 %v188
      %v655 = vpop.f32.mrf.mxu0
      %v656 = vadd.f32 0.0, %v655
      %v657 = vpop.f32.mrf.mxu0
      %658 = vmatprep.mubr.f32.mxu0 %v566
      %659 = vmatmul.mubr.f32.gmra.mxu0 %v190
      %v660 = vpop.f32.mrf.mxu0
      %v661 = vadd.f32 0.0, %v660
      %v662 = vpop.f32.mrf.mxu0
      %663 = vmatprep.mubr.f32.mxu0 %v569
      %664 = vmatmul.mubr.f32.gmra.mxu0 %v192
      %v665 = vpop.f32.mrf.mxu0
      %v666 = vadd.f32 0.0, %v665
      %v667 = vpop.f32.mrf.mxu0
      %668 = vdwg.mxu0
      %vm669 = vcmask 343040
      %670 = vst.msk [vmem:[%s170] sm:$0xff] %vm669, %v641
      %671 = vst.msk [vmem:[%s170 + $0x8] sm:$0xff] %vm669, %v646
      %672 = vst.msk [vmem:[%s170 + $0x10] sm:$0xff] %vm669, %v651
      %673 = vst.msk [vmem:[%s170 + $0x18] sm:$0xff] %vm669, %v656
      %674 = vst.msk [vmem:[%s170 + $0x20] sm:$0xff] %vm669, %v661
      %vm675 = vcmask 336896
      %676 = vst.msk [vmem:[%s170 + $0x28] sm:$0x3] %vm675, %v666
      %p677 = scmp.lt.s32.totalorder %s14, 1
      %s678 = scalar_select %p677, %s14, 1
      %s679 = smul.addr %s678, 6
      %s680 = smul.addr %s679, 8
      %s681 = scalar_lea.vmem %s3, %s680
      // Predicated region
      $region33: #{downsample2x_full_y.1} parent=31 // pred_check
        %p682 = pneg %p100
      $region34: #{downsample2x_full_y.1} parent=31 // pred_check_branch
        %684 = sbr.rel (%p682) target = $region36
      $region35: #{downsample2x_full_y.1} parent=31 // pred_region
        _
      $region36: #{downsample2x_full_y.1} parent=31 // pred_fallthru
        _
    $region32: #{downsample2x_full_y.1} parent=5 // pred_fallthru
      _
    %p685 = scmp.le.s32.totalorder 2, %s9
    // Predicated region
    $region37: #{downsample2x_full_y.1} parent=5 // pred_check
      %p686 = pneg %p685
    $region38: #{downsample2x_full_y.1} parent=5 // pred_check_branch
      %688 = sbr.rel (%p686) target = $region40
    $region39: #{downsample2x_full_y.1} parent=5 // pred_region
      %s689 = ssub.s32 %s9, 2
      // Predicated region
      $region41: #{downsample2x_full_y.1} parent=39 // pred_check
        %p690 = pneg %p106
      $region42: #{downsample2x_full_y.1} parent=39 // pred_check_branch
        %692 = sbr.rel (%p690) target = $region44
      $region43: #{downsample2x_full_y.1} parent=39 // pred_region
        %p693 = scmp.lt.s32.totalorder %s15, 1
        %s694 = scalar_select %p693, %s15, 1
        %s695 = smul.addr %s694, 6
        %s696 = smul.addr %s695, 8
        %s697 = scalar_lea.vmem %s3, %s696
      $region44: #{downsample2x_full_y.1} parent=39 // pred_fallthru
        _
    $region40: #{downsample2x_full_y.1} parent=5 // pred_fallthru
      _
  $region6: #{downsample2x_full_y.1} parent=0 // loop_footer
    %s13 = sadd.s32 1, %s9
  $region7: #{downsample2x_full_y.1} parent=0 // loop_footer_branch
    %8 = sbr.rel target = $region3
  $region8: #{downsample2x_full_y.1} parent=0 // loop_exit
    _

</llo_original>
